<compile_context>
chip_gen: v6e
topology: v6e:2x2x1
jax: 0.10.0
libtpu: 0.0.40
codegen_flags: <defaults>
</compile_context>

<pallas_src>
import jax
import jax.numpy as jnp
from jax.experimental import pallas as pl
from jax.experimental.pallas import tpu as pltpu

_MIB = 1024 * 1024
# Below this total size, pallas_call launch overhead dwarfs the copy: use a
# single full-array block (grid=()), no tiling, no masked tails.
_SMALL_BYTES = 4 * _MIB
# Per-block byte budget for the tiled path. in+out double-buffered => 4x this
# must stay within every generation's scoped VMEM (v5e 16 MiB default,
# v7x 32 MiB default / 64 MiB physical).
_MAX_BLOCK_BYTES = 4 * _MIB


def _copy_kernel(x_ref, o_ref):
    # Pure lane-dense tile copy; the flatten itself happens (for free) via a
    # row-major reshape in the wrapper.
    o_ref[...] = x_ref[...]


def flatten(x):
    """Pallas equivalent of torch Flatten: (N, d1, d2, ...) -> (N, prod(d))."""
    N = x.shape[0]
    flat = 1
    for d in x.shape[1:]:
        flat *= d

    # Row-major flatten is pure layout plumbing; do it in the wrapper so the
    # kernel sees a lane-dense (N, flat) slab.
    # TODO(synk): for a contiguous input this reshape alone already IS
    # torch's x.view(N, -1); the copy kernel exists only because a Pallas
    # kernel is mandated.
    x2 = x.reshape(N, flat)

    itemsize = jnp.dtype(x.dtype).itemsize
    total_bytes = N * flat * itemsize

    # ---- Fast path: small inputs -> one whole-array VMEM block, grid=(). ----
    if total_bytes <= _SMALL_BYTES:
        return pl.pallas_call(
            _copy_kernel,
            out_shape=jax.ShapeDtypeStruct((N, flat), x.dtype),
        )(x2)

    # ---- Tiled path: large inputs. ----
    # Sublane packing: 8 rows for 4-byte, 16 for 2-byte, 32 for 1-byte dtypes.
    sublane = max(8, 32 // itemsize)

    # Batch tile first (full N for realistic small batches), ...
    if N <= 256:
        tn = N  # full-dim block: always legal regardless of alignment
    else:
        tn = 256  # multiple of the sublane packing for every dtype

    # ... then grow the lane dim to consume the byte budget as a large
    # multiple of 128 so stores stay unmasked full-width vst.
    tf_budget = _MAX_BLOCK_BYTES // (tn * itemsize)
    tf = min(flat, (tf_budget // 128) * 128)
    tf = max(tf, min(flat, 128))

    grid = (pl.cdiv(N, tn), pl.cdiv(flat, tf))
    block_bytes = tn * tf * itemsize
    # Cover in+out double-buffered blocks explicitly; cap at 32 MiB so the
    # same setting is safe on v5e / v6e / v7x.
    vmem_limit = int(min(32 * _MIB, max(16 * _MIB, 4 * block_bytes + 2 * _MIB)))

    return pl.pallas_call(
        _copy_kernel,
        out_shape=jax.ShapeDtypeStruct((N, flat), x.dtype),
        grid=grid,
        in_specs=[pl.BlockSpec((tn, tf), lambda i, j: (i, j))],
        out_specs=pl.BlockSpec((tn, tf), lambda i, j: (i, j)),
        compiler_params=pltpu.CompilerParams(
            dimension_semantics=("parallel", "parallel"),
            vmem_limit_bytes=vmem_limit,
        ),
        cost_estimate=pl.CostEstimate(
            flops=0,
            transcendentals=0,
            bytes_accessed=2 * total_bytes,
        ),
    )(x2)


if __name__ == "__main__":
    key = jax.random.PRNGKey(0)

    # Small NCHW input consistent with a GAN feature map: (batch, C, H, W).
    # Hits the grid=() fast path.
    x = jax.random.normal(key, (2, 4, 16, 16), dtype=jnp.float32)
    out = jax.block_until_ready(flatten(x))
    ref = x.reshape(x.shape[0], -1)
    assert out.shape == (2, 4 * 16 * 16), out.shape
    assert out.dtype == x.dtype
    assert bool(jnp.all(out == ref))

    # Second small case with a non-divisible flattened axis (flat = 2700);
    # also the fast path, so no masked tail stores.
    y = jax.random.normal(jax.random.PRNGKey(0), (4, 3, 30, 30), dtype=jnp.float32)
    out2 = jax.block_until_ready(flatten(y))
    ref2 = y.reshape(y.shape[0], -1)
    assert out2.shape == (4, 3 * 30 * 30), out2.shape
    assert bool(jnp.all(out2 == ref2))

    # Third, moderate case (~6.25 MiB) that exercises the tiled path:
    # tn = N = 8, tf = 131072, grid = (1, 2) with a masked tail on the
    # second (parallel) step.
    z = jax.random.normal(jax.random.PRNGKey(0), (8, 8, 160, 160), dtype=jnp.float32)
    out3 = jax.block_until_ready(flatten(z))
    ref3 = z.reshape(z.shape[0], -1)
    assert out3.shape == (8, 8 * 160 * 160), out3.shape
    assert bool(jnp.all(out3 == ref3))

    print("KERNEL_OK")
</pallas_src>

<mosaic_0001>
module attributes {stable_mosaic.version = 11 : i64} {
  func.func @_copy_kernel(%arg0: memref<2x1024xf32, #tpu.memory_space<vmem>>, %arg1: memref<2x1024xf32, #tpu.memory_space<vmem>>) attributes {dimension_semantics = [], scalar_prefetch = 0 : i64, scratch_operands = 0 : i64, tpu.core_type = #tpu.core_type<tc>} {
    %c0 = arith.constant 0 : index
    %c0_0 = arith.constant 0 : index
    %0 = vector.load %arg0[%c0, %c0_0] : memref<2x1024xf32, #tpu.memory_space<vmem>>, vector<2x1024xf32>
    %c0_1 = arith.constant 0 : index
    %c0_2 = arith.constant 0 : index
    %1 = vector.load %arg1[%c0_1, %c0_2] : memref<2x1024xf32, #tpu.memory_space<vmem>>, vector<2x1024xf32>
    tpu.vector_store %arg1[%c0_1, %c0_2], %0 {strides = array<i32>} : memref<2x1024xf32, #tpu.memory_space<vmem>>, vector<2x1024xf32>,
    return
  }
}

</mosaic_0001>

<llo_original>
// kernel: tpu_custom_call.1
$region0: #{tpu_custom_call.1}
  #allocation0 [shape = 'u32[]', space=smem, size = 0x4, offset = 0x4, fixed_abs, tag = 'smem constant byte address 0x4 - core index']
  #allocation1 [shape = 'u32[144,128]{1,0:T(1,128)}', space=vmem, size = 0x12000, scoped, tag = 'internal scratch']
  %s0 = inlined_call_operand.hbm [shape: f32[2,1024], index: 0, kind: input, shape index: {}]
  %s1 = inlined_call_operand.hbm [shape: f32[2,1024], index: 1, kind: output, shape index: {}]
  %s2 = sld [smem:[#allocation0]]
  $region18: #{tpu_custom_call.1} parent=0
    _
  %s4 = ssub.s32 1, %s2
  %s5 = scalar_select 0, %s4, %s2
  $region1: #{tpu_custom_call.1} parent=0
    #allocation2 [shape = 'u8[8192]{0}', space=vmem, size = 0x2000, scoped, tag = 'input window, operand 0, single buffered']
    #allocation3 [shape = 's32[1]{0}', space=sflag, size = 0x4, scoped, tag = 'scoped memory for tpu_custom_call.1']
    #allocation4 [shape = 's32[1]{0}', space=sflag, size = 0x4, scoped, tag = 'scoped memory for tpu_custom_call.1']
    #allocation5 [shape = 'u8[8192]{0}', space=vmem, size = 0x2000, scoped, tag = 'output window, operand 0, single buffered']
    %6 = vsyncpa [#allocation3], 0
    %7 = vsyncpa [#allocation4], 0
    // Predicated region
    $region2: #{tpu_custom_call.1} parent=1 // pred_check
      _
    $region3: #{tpu_custom_call.1} parent=1 // pred_check_branch
      %9 = sbr.rel (0) target = $region5
    $region4: #{tpu_custom_call.1} parent=1 // pred_region
      %s11 = ssub.s32 256, 256
      %12 = vsyncadd [#allocation3], %s11
      %s14 = sshll.u32 [#allocation2], 4
      %s15 = int_to_ptr.vmem [resolvable:$true] %s14
      %17 = dma.hbm_to_vmem [thread:$0]  %s0, 256, %s15, [#allocation3]
    $region5: #{tpu_custom_call.1} parent=1 // pred_fallthru
      _
    // Predicated region
    $region6: #{tpu_custom_call.1} parent=1 // pred_check
      _
    $region7: #{tpu_custom_call.1} parent=1 // pred_check_branch
      %19 = sbr.rel (0) target = $region9
    $region8: #{tpu_custom_call.1} parent=1 // pred_region
      %20 = dma.done [#allocation3], 256
    $region9: #{tpu_custom_call.1} parent=1 // pred_fallthru
      _
    %v21 = vld [vmem:[#allocation2] sm:$0xff]
    %v22 = vld [vmem:[#allocation2 + $0x8] sm:$0xff]
    %23 = vst [vmem:[#allocation5] sm:$0xff] %v21
    %24 = vst [vmem:[#allocation5 + $0x8] sm:$0xff] %v22
    // Predicated region
    $region10: #{tpu_custom_call.1} parent=1 // pred_check
      _
    $region11: #{tpu_custom_call.1} parent=1 // pred_check_branch
      %26 = sbr.rel (0) target = $region13
    $region12: #{tpu_custom_call.1} parent=1 // pred_region
      %s28 = ssub.s32 256, 256
      %29 = vsyncadd [#allocation4], %s28
      %s31 = sshll.u32 [#allocation5], 4
      %s32 = int_to_ptr.vmem [resolvable:$true] %s31
      %34 = dma.vmem_to_hbm [thread:$0]  %s32, 256, %s1, [#allocation4]
    $region13: #{tpu_custom_call.1} parent=1 // pred_fallthru
      _
    // Predicated region
    $region14: #{tpu_custom_call.1} parent=1 // pred_check
      _
    $region15: #{tpu_custom_call.1} parent=1 // pred_check_branch
      %36 = sbr.rel (0) target = $region17
    $region16: #{tpu_custom_call.1} parent=1 // pred_region
      %37 = dma.done [#allocation4], 256
    $region17: #{tpu_custom_call.1} parent=1 // pred_fallthru
      _
    %38 = vsyncpa [#allocation3], 1
    %39 = vsyncpa [#allocation4], 1

</llo_original>
